<compile_context>
chip_gen: v5e
topology: v5e:2x2
jax: 0.10.0
libtpu: 0.0.40
codegen_flags: <defaults>
</compile_context>

<pallas_src>
import functools

import jax
import jax.numpy as jnp
from jax.experimental import pallas as pl
from jax.experimental.pallas import tpu as pltpu


_PAD_COS = -1.0e4  # scaled to -3e5: exp() underflows, padded classes contribute nothing


def _round_up(x, n):
    return (x + n - 1) // n * n


def _am_softmax_kernel(cos_ref, tgt_ref, loss_ref, m_sc, l_sc, t_sc, *, margin, scale):
    # cos_ref: (Bt, Ct) input dtype; tgt_ref: (Bt, 1) i32; loss_ref: (Bt, 1) f32
    # m_sc / l_sc / t_sc: (Bt, 1) f32 VMEM scratch (running max / sum-exp / target logit)
    k = pl.program_id(1)

    @pl.when(k == 0)
    def _init():
        m_sc[...] = jnp.full(m_sc.shape, -jnp.inf, dtype=jnp.float32)
        l_sc[...] = jnp.zeros(l_sc.shape, dtype=jnp.float32)
        t_sc[...] = jnp.zeros(t_sc.shape, dtype=jnp.float32)

    cos = cos_ref[...].astype(jnp.float32)            # upcast right after load
    tgt = tgt_ref[...]                                # (Bt, 1) i32
    bt, ct = cos.shape

    # Margin via select (no one_hot materialization). NOTE: class-block offset k*Ct.
    class_ids = jax.lax.broadcasted_iota(jnp.int32, (bt, ct), 1) + k * ct
    is_target = class_ids == tgt                      # (Bt, Ct) bool

    logits = scale * cos
    logits = jnp.where(is_target, logits - scale * margin, logits)

    # Online softmax update.
    m_prev = m_sc[...]
    m_new = jnp.maximum(m_prev, jnp.max(logits, axis=-1, keepdims=True))
    alpha = jnp.exp(m_prev - m_new)                   # 0 on the first step (-inf prev)
    l_sc[...] = alpha * l_sc[...] + jnp.sum(jnp.exp(logits - m_new), axis=-1, keepdims=True)
    m_sc[...] = m_new
    # Target class lives in exactly one class tile -> masked sum accumulates its logit.
    t_sc[...] += jnp.sum(jnp.where(is_target, logits, 0.0), axis=-1, keepdims=True)

    @pl.when(k == pl.num_programs(1) - 1)
    def _finalize():
        # CE = logsumexp(logits) - logit[target] = m + log(l) - t
        loss_ref[...] = (m_sc[...] + jnp.log(l_sc[...]) - t_sc[...]).astype(loss_ref.dtype)


def am_softmax_loss(cos_theta, target, *, m=0.5, s=30.0, block_b=256, block_c=2048):
    """cos_theta: (B, C) float32 or bfloat16, target: (B,) int -> scalar float32 loss."""
    b, c = cos_theta.shape

    bt = min(block_b, _round_up(b, 8))
    ct = min(block_c, _round_up(c, 128))
    b_pad = _round_up(b, bt)
    c_pad = _round_up(c, ct)

    # Pad classes with a hugely negative cosine (zero softmax weight) and batch rows
    # with dummy data (sliced off below); padded targets = -1 never match any class.
    cos_padded = jnp.pad(
        cos_theta, ((0, b_pad - b), (0, c_pad - c)), constant_values=_PAD_COS
    )
    tgt_padded = jnp.pad(
        target.astype(jnp.int32).reshape(b, 1), ((0, b_pad - b), (0, 0)), constant_values=-1
    )

    kernel = functools.partial(_am_softmax_kernel, margin=float(m), scale=float(s))

    per_row_loss = pl.pallas_call(
        kernel,
        out_shape=jax.ShapeDtypeStruct((b_pad, 1), jnp.float32),
        grid_spec=pltpu.PrefetchScalarGridSpec(
            num_scalar_prefetch=0,
            grid=(b_pad // bt, c_pad // ct),
            in_specs=[
                pl.BlockSpec((bt, ct), lambda i, k: (i, k)),
                pl.BlockSpec((bt, 1), lambda i, k: (i, 0)),
            ],
            out_specs=pl.BlockSpec((bt, 1), lambda i, k: (i, 0)),
            scratch_shapes=[
                pltpu.VMEM((bt, 1), jnp.float32),  # running max
                pltpu.VMEM((bt, 1), jnp.float32),  # running sum of exp
                pltpu.VMEM((bt, 1), jnp.float32),  # target logit
            ],
        ),
        compiler_params=pltpu.CompilerParams(
            dimension_semantics=("parallel", "arbitrary"),
        ),
    )(cos_padded, tgt_padded)

    # Final tiny O(B) reduction on the *final* per-row losses (matches PyTorch
    # `losses.sum() / max(losses.nonzero().size(0), 1)`).
    losses = per_row_loss[:b, 0]
    nonzero_count = jnp.sum((losses != 0.0).astype(jnp.float32))
    denom = jnp.maximum(nonzero_count, 1.0)
    return jnp.sum(losses) / denom


def _reference(cos_theta, target, m=0.5, s=30.0):
    # pure-JAX reference mirroring the PyTorch default path
    b, c = cos_theta.shape
    cos_theta = cos_theta.astype(jnp.float32)
    one_hot = jax.nn.one_hot(target, c, dtype=jnp.float32)
    logits = s * (cos_theta - m * one_hot)
    logp = jax.nn.log_softmax(logits, axis=-1)
    losses = -jnp.sum(one_hot * logp, axis=-1)
    denom = jnp.maximum(jnp.sum(losses != 0.0), 1).astype(jnp.float32)
    return jnp.sum(losses) / denom


# TODO(synk): non-default AMSoftmaxLoss options (arc margin, gamma>0 focal loss, t>1,
# label smoothing, conf penalty, pr_product, symmetric CE, class weights, adaptive
# margins, scale scheduling) are not implemented — only the default forward path is.


if __name__ == "__main__":
    key = jax.random.PRNGKey(0)
    k1, k2 = jax.random.split(key)

    # Small shapes chosen to exercise tiling + padding: grid = (2, 2) with (8, 128) blocks.
    batch, num_classes = 10, 200
    cos_theta = jax.random.uniform(
        k1, (batch, num_classes), dtype=jnp.float32, minval=-1.0, maxval=1.0
    )
    target = jax.random.randint(k2, (batch,), 0, num_classes, dtype=jnp.int32)

    # f32 path — must match the reference tightly.
    loss = am_softmax_loss(cos_theta, target, m=0.5, s=30.0, block_b=8, block_c=128)
    jax.block_until_ready(loss)
    ref = _reference(cos_theta, target, m=0.5, s=30.0)
    assert jnp.allclose(loss, ref, rtol=1e-5, atol=1e-5), (loss, ref)

    # bf16 storage path (halves HBM traffic); compute stays f32 inside the kernel.
    loss_bf16 = am_softmax_loss(
        cos_theta.astype(jnp.bfloat16), target, m=0.5, s=30.0, block_b=8, block_c=128
    )
    jax.block_until_ready(loss_bf16)
    ref_bf16 = _reference(cos_theta.astype(jnp.bfloat16).astype(jnp.float32), target)
    assert jnp.allclose(loss_bf16, ref_bf16, rtol=2e-2, atol=2e-2), (loss_bf16, ref_bf16)

    print("KERNEL_OK")
</pallas_src>

<mosaic_0001>
module attributes {stable_mosaic.version = 11 : i64} {
  func.func @_am_softmax_kernel(%arg0: i32, %arg1: i32, %arg2: memref<8x128xf32, #tpu.memory_space<vmem>>, %arg3: memref<8x1xi32, #tpu.memory_space<vmem>>, %arg4: memref<8x1xf32, #tpu.memory_space<vmem>>, %arg5: memref<8x1xf32, #tpu.memory_space<vmem>>, %arg6: memref<8x1xf32, #tpu.memory_space<vmem>>, %arg7: memref<8x1xf32, #tpu.memory_space<vmem>>) attributes {dimension_semantics = [#tpu.dimension_semantics<parallel>, #tpu.dimension_semantics<arbitrary>], iteration_bounds = array<i64: 2, 2>, scalar_prefetch = 0 : i64, scratch_operands = 3 : i64, tpu.core_type = #tpu.core_type<tc>, window_params = [{transform_indices = @transform_0, window_bounds = array<i64: 8, 128>}, {transform_indices = @transform_1, window_bounds = array<i64: 8, 1>}, {transform_indices = @transform_2, window_bounds = array<i64: 8, 1>}]} {
    %c0_i32 = arith.constant 0 : i32
    %0 = arith.cmpi eq, %arg1, %c0_i32 : i32
    %1 = arith.extui %0 : i1 to i32
    %c0_i32_0 = arith.constant 0 : i32
    %2 = arith.cmpi ne, %1, %c0_i32_0 : i32
    scf.if %2 {
      %cst_22 = arith.constant 0xFF800000 : f32
      %42 = vector.broadcast %cst_22 : f32 to vector<8x1xf32>
      %c0_23 = arith.constant 0 : index
      %c0_24 = arith.constant 0 : index
      %43 = vector.load %arg5[%c0_23, %c0_24] : memref<8x1xf32, #tpu.memory_space<vmem>>, vector<8x1xf32>
      tpu.vector_store %arg5[%c0_23, %c0_24], %42 {strides = array<i32>} : memref<8x1xf32, #tpu.memory_space<vmem>>, vector<8x1xf32>,
      %cst_25 = arith.constant 0.000000e+00 : f32
      %44 = vector.broadcast %cst_25 : f32 to vector<8x1xf32>
      %c0_26 = arith.constant 0 : index
      %c0_27 = arith.constant 0 : index
      %45 = vector.load %arg6[%c0_26, %c0_27] : memref<8x1xf32, #tpu.memory_space<vmem>>, vector<8x1xf32>
      tpu.vector_store %arg6[%c0_26, %c0_27], %44 {strides = array<i32>} : memref<8x1xf32, #tpu.memory_space<vmem>>, vector<8x1xf32>,
      %cst_28 = arith.constant 0.000000e+00 : f32
      %46 = vector.broadcast %cst_28 : f32 to vector<8x1xf32>
      %c0_29 = arith.constant 0 : index
      %c0_30 = arith.constant 0 : index
      %47 = vector.load %arg7[%c0_29, %c0_30] : memref<8x1xf32, #tpu.memory_space<vmem>>, vector<8x1xf32>
      tpu.vector_store %arg7[%c0_29, %c0_30], %46 {strides = array<i32>} : memref<8x1xf32, #tpu.memory_space<vmem>>, vector<8x1xf32>,
    } else {
    }
    %c0 = arith.constant 0 : index
    %c0_1 = arith.constant 0 : index
    %3 = vector.load %arg2[%c0, %c0_1] : memref<8x128xf32, #tpu.memory_space<vmem>>, vector<8x128xf32>
    %c0_2 = arith.constant 0 : index
    %c0_3 = arith.constant 0 : index
    %4 = vector.load %arg3[%c0_2, %c0_3] : memref<8x1xi32, #tpu.memory_space<vmem>>, vector<8x1xi32>
    %5 = tpu.iota {dimensions = array<i32: 1>} : vector<8x128xi32>
    %c128_i32 = arith.constant 128 : i32
    %6 = arith.muli %arg1, %c128_i32 : i32
    %7 = vector.broadcast %6 : i32 to vector<8x128xi32>
    %8 = arith.addi %5, %7 : vector<8x128xi32>
    %9 = vector.broadcast %4 : vector<8x1xi32> to vector<8x128xi32>
    %10 = arith.cmpi eq, %8, %9 : vector<8x128xi32>
    %cst = arith.constant 3.000000e+01 : f32
    %11 = vector.broadcast %cst : f32 to vector<8x128xf32>
    %12 = arith.mulf %11, %3 : vector<8x128xf32>
    %cst_4 = arith.constant 1.500000e+01 : f32
    %13 = vector.broadcast %cst_4 : f32 to vector<8x128xf32>
    %14 = arith.subf %12, %13 : vector<8x128xf32>
    %15 = arith.select %10, %14, %12 : vector<8x128xi1>, vector<8x128xf32>
    %c0_5 = arith.constant 0 : index
    %c0_6 = arith.constant 0 : index
    %16 = vector.load %arg5[%c0_5, %c0_6] : memref<8x1xf32, #tpu.memory_space<vmem>>, vector<8x1xf32>
    %cst_7 = arith.constant dense<0xFF800000> : vector<8xf32>
    %17 = vector.multi_reduction <maximumf>, %15, %cst_7 [1] : vector<8x128xf32> to vector<8xf32>
    %18 = vector.shape_cast %17 : vector<8xf32> to vector<8x1xf32>
    %19 = arith.maximumf %16, %18 : vector<8x1xf32>
    %20 = arith.subf %16, %19 : vector<8x1xf32>
    %21 = math.exp %20 : vector<8x1xf32>
    %c0_8 = arith.constant 0 : index
    %c0_9 = arith.constant 0 : index
    %22 = vector.load %arg6[%c0_8, %c0_9] : memref<8x1xf32, #tpu.memory_space<vmem>>, vector<8x1xf32>
    %23 = arith.mulf %21, %22 : vector<8x1xf32>
    %24 = vector.broadcast %19 : vector<8x1xf32> to vector<8x128xf32>
    %25 = arith.subf %15, %24 : vector<8x128xf32>
    %26 = math.exp %25 : vector<8x128xf32>
    %cst_10 = arith.constant dense<0.000000e+00> : vector<8xf32>
    %27 = vector.multi_reduction <add>, %26, %cst_10 [1] : vector<8x128xf32> to vector<8xf32>
    %28 = vector.shape_cast %27 : vector<8xf32> to vector<8x1xf32>
    %29 = arith.addf %23, %28 : vector<8x1xf32>
    %c0_11 = arith.constant 0 : index
    %c0_12 = arith.constant 0 : index
    %30 = vector.load %arg6[%c0_11, %c0_12] : memref<8x1xf32, #tpu.memory_space<vmem>>, vector<8x1xf32>
    tpu.vector_store %arg6[%c0_11, %c0_12], %29 {strides = array<i32>} : memref<8x1xf32, #tpu.memory_space<vmem>>, vector<8x1xf32>,
    %c0_13 = arith.constant 0 : index
    %c0_14 = arith.constant 0 : index
    %31 = vector.load %arg5[%c0_13, %c0_14] : memref<8x1xf32, #tpu.memory_space<vmem>>, vector<8x1xf32>
    tpu.vector_store %arg5[%c0_13, %c0_14], %19 {strides = array<i32>} : memref<8x1xf32, #tpu.memory_space<vmem>>, vector<8x1xf32>,
    %c0_15 = arith.constant 0 : index
    %c0_16 = arith.constant 0 : index
    %32 = vector.load %arg7[%c0_15, %c0_16] : memref<8x1xf32, #tpu.memory_space<vmem>>, vector<8x1xf32>
    %cst_17 = arith.constant 0.000000e+00 : f32
    %33 = vector.broadcast %cst_17 : f32 to vector<8x128xf32>
    %34 = arith.select %10, %15, %33 : vector<8x128xi1>, vector<8x128xf32>
    %cst_18 = arith.constant dense<0.000000e+00> : vector<8xf32>
    %35 = vector.multi_reduction <add>, %34, %cst_18 [1] : vector<8x128xf32> to vector<8xf32>
    %36 = vector.shape_cast %35 : vector<8xf32> to vector<8x1xf32>
    %37 = arith.addf %32, %36 : vector<8x1xf32>
    %c0_19 = arith.constant 0 : index
    %c0_20 = arith.constant 0 : index
    %38 = vector.load %arg7[%c0_19, %c0_20] : memref<8x1xf32, #tpu.memory_space<vmem>>, vector<8x1xf32>
    tpu.vector_store %arg7[%c0_19, %c0_20], %37 {strides = array<i32>} : memref<8x1xf32, #tpu.memory_space<vmem>>, vector<8x1xf32>,
    %c1_i32 = arith.constant 1 : i32
    %39 = arith.cmpi eq, %arg1, %c1_i32 : i32
    %40 = arith.extui %39 : i1 to i32
    %c0_i32_21 = arith.constant 0 : i32
    %41 = arith.cmpi ne, %40, %c0_i32_21 : i32
    scf.if %41 {
      %c0_22 = arith.constant 0 : index
      %c0_23 = arith.constant 0 : index
      %42 = vector.load %arg5[%c0_22, %c0_23] : memref<8x1xf32, #tpu.memory_space<vmem>>, vector<8x1xf32>
      %c0_24 = arith.constant 0 : index
      %c0_25 = arith.constant 0 : index
      %43 = vector.load %arg6[%c0_24, %c0_25] : memref<8x1xf32, #tpu.memory_space<vmem>>, vector<8x1xf32>
      %44 = math.log %43 : vector<8x1xf32>
      %45 = arith.addf %42, %44 : vector<8x1xf32>
      %c0_26 = arith.constant 0 : index
      %c0_27 = arith.constant 0 : index
      %46 = vector.load %arg7[%c0_26, %c0_27] : memref<8x1xf32, #tpu.memory_space<vmem>>, vector<8x1xf32>
      %47 = arith.subf %45, %46 : vector<8x1xf32>
      %c0_28 = arith.constant 0 : index
      %c0_29 = arith.constant 0 : index
      %48 = vector.load %arg4[%c0_28, %c0_29] : memref<8x1xf32, #tpu.memory_space<vmem>>, vector<8x1xf32>
      tpu.vector_store %arg4[%c0_28, %c0_29], %47 {strides = array<i32>} : memref<8x1xf32, #tpu.memory_space<vmem>>, vector<8x1xf32>,
    } else {
    }
    return
  }
  func.func @transform_0(%arg0: i32, %arg1: i32) -> (i32, i32) {
    %c0_i32 = arith.constant 0 : i32
    return %arg0, %arg1 : i32, i32
  }
  func.func @transform_1(%arg0: i32, %arg1: i32) -> (i32, i32) {
    %c0_i32 = arith.constant 0 : i32
    %c0_i32_0 = arith.constant 0 : i32
    return %arg0, %c0_i32 : i32, i32
  }
  func.func @transform_2(%arg0: i32, %arg1: i32) -> (i32, i32) {
    %c0_i32 = arith.constant 0 : i32
    %c0_i32_0 = arith.constant 0 : i32
    return %arg0, %c0_i32 : i32, i32
  }
}

</mosaic_0001>

<llo_original>
// kernel: tpu_custom_call.1
$region0: #{tpu_custom_call.1}
  #allocation0 [shape = 'u32[]', space=smem, size = 0x4, offset = 0x4, fixed_abs, tag = 'smem constant byte address 0x4 - core index']
  #allocation1 [shape = 'u32[72,128]{1,0:T(1,128)}', space=vmem, size = 0x9000, scoped, tag = 'internal scratch']
  #allocation2 [shape = 'f32[8,1]{1,0:T(8,128)}', space=vmem, size = 0x1000, scoped, tag = 'scratch operand']
  #allocation3 [shape = 'f32[8,1]{1,0:T(8,128)}', space=vmem, size = 0x1000, scoped, tag = 'scratch operand']
  #allocation4 [shape = 'f32[8,1]{1,0:T(8,128)}', space=vmem, size = 0x1000, scoped, tag = 'scratch operand']
  %s0 = inlined_call_operand.hbm [shape: f32[16,256], index: 0, kind: input, shape index: {}]
  %s1 = inlined_call_operand.vmem [shape: s32[16,1], index: 1, kind: input, shape index: {}]
  %s2 = inlined_call_operand.vmem [shape: f32[16,1], index: 2, kind: output, shape index: {}]
  %s3 = sld [smem:[#allocation0]]
  $region53: #{tpu_custom_call.1} parent=0
    _
  %s5 = ssub.s32 1, %s3
  %s6 = scalar_select 0, %s5, %s3
  $region1: #{tpu_custom_call.1} parent=0
    #allocation5 [shape = 'u8[8192]{0}', space=vmem, size = 0x2000, scoped, tag = 'input window, operand 0']
    #allocation6 [shape = 's32[2]{0}', space=sflag, size = 0x8, scoped, tag = 'scoped memory for tpu_custom_call.1']
    %7 = vsyncpa [#allocation6], 0
    %s8 = scalar_lea.sflag [#allocation6], 1
    %9 = vsyncpa %s8, 0
    loop: start=0, step=1, limit=6
    $region2: #{tpu_custom_call.1} parent=1 // loop_pre_header
      _
    $region3: #{tpu_custom_call.1} parent=1 // loop_header
      %s11 = sphi 0, %s15
      %p12 = scmp.ge.s32.totalorder %s11, 6
      %s18 = sphi 0, %s30
      %s19 = sphi 0, %s26
      %s20 = sphi 0, %s18
      %s21 = sphi 0, %s19
      %s22 = sphi 0, %s20
      %s23 = sphi 0, %s21
      %s35 = sphi 0, %s37
      %s38 = sphi 0, %s35
      %s39 = sphi 0, %s38
      %s55 = sphi 0, %s39
      %s61 = sphi 0, %s63
      %s64 = sphi 0, %s61
      %s65 = sphi 0, %s64
      %s81 = sphi 0, %s65
      %s87 = sphi 0, %s89
      %s90 = sphi 0, %s87
      %s91 = sphi 0, %s90
      %s107 = sphi 0, %s91
    $region4: #{tpu_custom_call.1} parent=1 // loop_header_branch
      %14 = sbr.rel (%p12) target = $region8
    $region5: #{tpu_custom_call.1} parent=1 // loop_body
      %s16 = ssub.s32 %s11, 1
      %s17 = ssub.s32 %s11, 2
      %s24 = sadd.s32 1, %s19
      %p25 = scmp.ge.s32.totalorder %s24, 2
      %s26 = scalar_select %p25, 0, %s24
      %s27 = sadd.s32 1, %s18
      %s28 = scalar_select %p25, %s27, %s18
      %p29 = scmp.ge.s32.totalorder %s28, 2
      %s30 = scalar_select %p29, 0, %s28
      %s31 = ssub.s32 %s18, %s30
      %s32 = ssub.s32 %s19, %s26
      %s33 = sor.u32 %s31, %s32
      %p34 = scmp.eq.s32.totalorder %s33, 0
      %s36 = sadd.s32 %s35, 1
      %s37 = scalar_select %p34, %s35, %s36
      %p40 = pneg %p34
      %p41 = scmp.eq.s32.totalorder %s11, 3
      %p42 = por %p40, %p41
      %p43 = scmp.ne.s32.totalorder %s35, %s38
      %p44 = scmp.eq.s32.totalorder %s11, 0
      %p45 = por %p43, %p44
      %p46 = scmp.ne.s32.totalorder %s35, %s38
      %p47 = scmp.eq.s32.totalorder %s16, 3
      %p48 = por %p46, %p47
      %p49 = scmp.ne.s32.totalorder %s38, %s39
      %p50 = scmp.eq.s32.totalorder %s16, 0
      %p51 = por %p49, %p50
      %p52 = scmp.ne.s32.totalorder %s38, %s39
      %p53 = scmp.eq.s32.totalorder %s17, 3
      %p54 = por %p52, %p53
      %p56 = scmp.ne.s32.totalorder %s39, %s55
      %p57 = scmp.eq.s32.totalorder %s17, 0
      %p58 = por %p56, %p57
      %s59 = ssub.s32 %s18, %s30
      %p60 = scmp.eq.s32.totalorder %s59, 0
      %s62 = sadd.s32 %s61, 1
      %s63 = scalar_select %p60, %s61, %s62
      %p66 = pneg %p60
      %p67 = scmp.eq.s32.totalorder %s11, 3
      %p68 = por %p66, %p67
      %p69 = scmp.ne.s32.totalorder %s61, %s64
      %p70 = scmp.eq.s32.totalorder %s11, 0
      %p71 = por %p69, %p70
      %p72 = scmp.ne.s32.totalorder %s61, %s64
      %p73 = scmp.eq.s32.totalorder %s16, 3
      %p74 = por %p72, %p73
      %p75 = scmp.ne.s32.totalorder %s64, %s65
      %p76 = scmp.eq.s32.totalorder %s16, 0
      %p77 = por %p75, %p76
      %p78 = scmp.ne.s32.totalorder %s64, %s65
      %p79 = scmp.eq.s32.totalorder %s17, 3
      %p80 = por %p78, %p79
      %p82 = scmp.ne.s32.totalorder %s65, %s81
      %p83 = scmp.eq.s32.totalorder %s17, 0
      %p84 = por %p82, %p83
      %s85 = ssub.s32 %s18, %s30
      %p86 = scmp.eq.s32.totalorder %s85, 0
      %s88 = sadd.s32 %s87, 1
      %s89 = scalar_select %p86, %s87, %s88
      %p92 = pneg %p86
      %p93 = scmp.eq.s32.totalorder %s11, 3
      %p94 = por %p92, %p93
      %p95 = scmp.ne.s32.totalorder %s87, %s90
      %p96 = scmp.eq.s32.totalorder %s11, 0
      %p97 = por %p95, %p96
      %p98 = scmp.ne.s32.totalorder %s87, %s90
      %p99 = scmp.eq.s32.totalorder %s16, 3
      %p100 = por %p98, %p99
      %p101 = scmp.ne.s32.totalorder %s90, %s91
      %p102 = scmp.eq.s32.totalorder %s16, 0
      %p103 = por %p101, %p102
      %p104 = scmp.ne.s32.totalorder %s90, %s91
      %p105 = scmp.eq.s32.totalorder %s17, 3
      %p106 = por %p104, %p105
      %p108 = scmp.ne.s32.totalorder %s91, %s107
      %p109 = scmp.eq.s32.totalorder %s17, 0
      %p110 = por %p108, %p109
      %p111 = scmp.le.s32.totalorder 1, %s11
      %p112 = scmp.lt.s32.totalorder %s11, 5
      %p113 = pnand %p111, %p112
      %p114 = pneg %p113
      // Predicated region
      $region9: #{tpu_custom_call.1} parent=5 // pred_check
        _
      $region10: #{tpu_custom_call.1} parent=5 // pred_check_branch
        %116 = sbr.rel (%p113) target = $region12
      $region11: #{tpu_custom_call.1} parent=5 // pred_region
        %s117 = ssub.s32 %s11, 1
      $region12: #{tpu_custom_call.1} parent=5 // pred_fallthru
        _
      %p118 = scmp.lt.s32.totalorder %s11, 4
      // Predicated region
      $region13: #{tpu_custom_call.1} parent=5 // pred_check
        %p119 = pneg %p118
      $region14: #{tpu_custom_call.1} parent=5 // pred_check_branch
        %121 = sbr.rel (%p119) target = $region16
      $region15: #{tpu_custom_call.1} parent=5 // pred_region
        // Predicated region
        $region17: #{tpu_custom_call.1} parent=15 // pred_check
          %p122 = pneg %p45
        $region18: #{tpu_custom_call.1} parent=15 // pred_check_branch
          %124 = sbr.rel (%p122) target = $region20
        $region19: #{tpu_custom_call.1} parent=15 // pred_region
          %s125 = sand.u32 %s35, 1
          %s126 = scalar_lea.sflag [#allocation6], %s125
          %s127 = sand.u32 %s35, 1
          %s128 = smul.addr %s127, 8
          %s129 = scalar_lea.vmem [#allocation5], %s128
          %131 = vsyncadd %s126, 0
          %s132 = smul.addr %s18, 2
          %s133 = sadd.s32 %s19, %s132
          %s134 = smul.addr %s133, 8
          %s135 = scalar_lea.hbm %s0, %s134
          %s137 = sshll.u32 %s135, 4
          %s138 = int_to_ptr.hbm [resolvable:$true] %s137
          %s139 = sshll.u32 %s129, 4
          %s140 = int_to_ptr.vmem [resolvable:$true] %s139
          %142 = dma.hbm_to_vmem [thread:$0]  %s138, 128, %s140, %s126
        $region20: #{tpu_custom_call.1} parent=15 // pred_fallthru
          _
        // Predicated region
        $region21: #{tpu_custom_call.1} parent=15 // pred_check
          %p143 = pneg %p71
        $region22: #{tpu_custom_call.1} parent=15 // pred_check_branch
          %145 = sbr.rel (%p143) target = $region24
        $region23: #{tpu_custom_call.1} parent=15 // pred_region
          %p146 = scmp.lt.s32.totalorder %s18, 1
          %s147 = scalar_select %p146, %s18, 1
          %s148 = smul.addr %s147, 8
          %s149 = scalar_lea.vmem %s1, %s148
        $region24: #{tpu_custom_call.1} parent=15 // pred_fallthru
          _
      $region16: #{tpu_custom_call.1} parent=5 // pred_fallthru
        _
      %p150 = scmp.le.s32.totalorder 1, %s11
      %p151 = scmp.lt.s32.totalorder %s11, 5
      %p152 = pnand %p150, %p151
      %p153 = pneg %p152
      // Predicated region
      $region25: #{tpu_custom_call.1} parent=5 // pred_check
        _
      $region26: #{tpu_custom_call.1} parent=5 // pred_check_branch
        %155 = sbr.rel (%p152) target = $region28
      $region27: #{tpu_custom_call.1} parent=5 // pred_region
        %s156 = ssub.s32 %s11, 1
        %s157 = sand.u32 %s38, 1
        %s158 = scalar_lea.sflag [#allocation6], %s157
        %s159 = sand.u32 %s38, 1
        %s160 = smul.addr %s159, 8
        %s161 = scalar_lea.vmem [#allocation5], %s160
        // Predicated region
        $region29: #{tpu_custom_call.1} parent=27 // pred_check
          %p162 = pneg %p51
        $region30: #{tpu_custom_call.1} parent=27 // pred_check_branch
          %164 = sbr.rel (%p162) target = $region32
        $region31: #{tpu_custom_call.1} parent=27 // pred_region
          %166 = dma.done %s158, 128
        $region32: #{tpu_custom_call.1} parent=27 // pred_fallthru
          _
        %s167 = sand.u32 %s38, 1
        %s168 = scalar_lea.sflag [#allocation6], %s167
        %s169 = sand.u32 %s38, 1
        %s170 = smul.addr %s169, 8
        %s171 = scalar_lea.vmem [#allocation5], %s170
        %p172 = pneg %p51
        %p173 = pneg %p48
        %p174 = scmp.lt.s32.totalorder %s20, 1
        %s175 = scalar_select %p174, %s20, 1
        %s176 = smul.addr %s175, 8
        %s177 = scalar_lea.vmem %s1, %s176
        %p178 = pneg %p77
        %p179 = pneg %p74
        %p180 = pneg %p103
        %p181 = pneg %p100
        %p182 = scmp.lt.s32.totalorder %s20, 1
        %s183 = scalar_select %p182, %s20, 1
        %s184 = smul.addr %s183, 8
        %s185 = scalar_lea.vmem %s2, %s184
        %p186 = scmp.lt.s32.totalorder %s20, 1
        %s187 = scalar_select %p186, %s20, 1
        %s188 = smul.addr %s187, 8
        %s189 = scalar_lea.vmem %s1, %s188
        %p190 = scmp.lt.s32.totalorder %s20, 1
        %s191 = scalar_select %p190, %s20, 1
        %s192 = smul.addr %s191, 8
        %s193 = scalar_lea.vmem %s2, %s192
        %p194 = scmp.eq.s32.totalorder %s21, 0
        // Predicated region
        $region33: #{tpu_custom_call.1} parent=27 // pred_check
          %p195 = pneg %p194
        $region34: #{tpu_custom_call.1} parent=27 // pred_check_branch
          %197 = sbr.rel (%p195) target = $region36
        $region35: #{tpu_custom_call.1} parent=27 // pred_region
          %vm198 = vcmask 7168
          %199 = vst.msk [vmem:[#allocation2] sm:$0xff] %vm198, -inf
          %200 = vst.msk [vmem:[#allocation3] sm:$0xff] %vm198, 0.0
          %201 = vst.msk [vmem:[#allocation4] sm:$0xff] %vm198, 0.0
        $region36: #{tpu_custom_call.1} parent=27 // pred_fallthru
          _
        %v202 = vld [vmem:[%s161] sm:$0xff]
        %v203 = vld [vmem:[%s189] sm:$0xff]
        %v204 = vlaneseq
        %v205 = vand.u32 %v204, 127
        %s206 = smul.u32 %s21, 128
        %v207 = vstv %s206
        %v208 = vadd.s32 %v205, %v207
        %209 = vset.pattern.permute.xlu0 0
        %210 = vperm.xlu0 %209, %v203
        %v211 = vpop.permute.xlu0 %210
        %vm212 = vcmp.eq.s32.totalorder %v208, %v211
        %v213 = vmul.f32 %v202, 30.0
        %v214 = vsub.f32 %v213, 15.0
        %v215 = vsel %vm212, %v214, %v213
        %v216 = vld [vmem:[#allocation2] sm:$0xff]
        %217 = vmax.xlane.f32.xlu0 %v215
        %v218 = vpop.xlane.xlu0 %217
        %v219 = vmax.f32 %v216, %v218
        %v220 = vsub.f32 %v216, %v219
        %v221 = vmul.f32 %v220, 1.442695
        %v222 = vpow.pop %v221
        %v223 = vld [vmem:[#allocation3] sm:$0xff]
        %v224 = vmul.f32 %v222, %v223
        %226 = vset.pattern.permute.xlu0 0
        %227 = vperm.xlu0 %226, %v219
        %v228 = vpop.permute.xlu0 %227
        %v230 = vsub.f32 %v215, %v228
        %v231 = vmul.f32 %v230, 1.442695
        %v232 = vpow.pop %v231
        %233 = vadd.xlane.f32.xlu0 %v232
        %v234 = vpop.xlane.xlu0 %233
        %v235 = vadd.f32 %v224, %v234
        %vm236 = vcmask 7168
        %237 = vst.msk [vmem:[#allocation3] sm:$0xff] %vm236, %v235
        %238 = vst.msk [vmem:[#allocation2] sm:$0xff] %vm236, %v219
        %v239 = vld [vmem:[#allocation4] sm:$0xff]
        %v240 = vsel %vm212, %v214, 0.0
        %241 = vadd.xlane.f32.xlu0 %v240
        %v242 = vpop.xlane.xlu0 %241
        %v243 = vadd.f32 %v239, %v242
        %244 = vst.msk [vmem:[#allocation4] sm:$0xff] %vm236, %v243
        %p245 = scmp.eq.s32.totalorder %s21, 1
        // Predicated region
        $region37: #{tpu_custom_call.1} parent=27 // pred_check
          %p246 = pneg %p245
        $region38: #{tpu_custom_call.1} parent=27 // pred_check_branch
          %248 = sbr.rel (%p246) target = $region40
        $region39: #{tpu_custom_call.1} parent=27 // pred_region
          %v249 = vld [vmem:[#allocation2] sm:$0xff]
          %v250 = vld [vmem:[#allocation3] sm:$0xff]
          %v251 = vlog2.pop %v250
          %v252 = vmul.f32 %v251, 0.6931472
          %v253 = vadd.f32 %v249, %v252
          %v254 = vld [vmem:[#allocation4] sm:$0xff]
          %v255 = vsub.f32 %v253, %v254
          %256 = vst.msk [vmem:[%s193] sm:$0xff] %vm236, %v255
        $region40: #{tpu_custom_call.1} parent=27 // pred_fallthru
          _
        %p257 = scmp.lt.s32.totalorder %s20, 1
        %s258 = scalar_select %p257, %s20, 1
        %s259 = smul.addr %s258, 8
        %s260 = scalar_lea.vmem %s2, %s259
        // Predicated region
        $region41: #{tpu_custom_call.1} parent=27 // pred_check
          %p261 = pneg %p100
        $region42: #{tpu_custom_call.1} parent=27 // pred_check_branch
          %263 = sbr.rel (%p261) target = $region44
        $region43: #{tpu_custom_call.1} parent=27 // pred_region
          _
        $region44: #{tpu_custom_call.1} parent=27 // pred_fallthru
          _
      $region28: #{tpu_custom_call.1} parent=5 // pred_fallthru
        _
      %p264 = scmp.le.s32.totalorder 2, %s11
      // Predicated region
      $region45: #{tpu_custom_call.1} parent=5 // pred_check
        %p265 = pneg %p264
      $region46: #{tpu_custom_call.1} parent=5 // pred_check_branch
        %267 = sbr.rel (%p265) target = $region48
      $region47: #{tpu_custom_call.1} parent=5 // pred_region
        %s268 = ssub.s32 %s11, 2
        // Predicated region
        $region49: #{tpu_custom_call.1} parent=47 // pred_check
          %p269 = pneg %p106
        $region50: #{tpu_custom_call.1} parent=47 // pred_check_branch
          %271 = sbr.rel (%p269) target = $region52
        $region51: #{tpu_custom_call.1} parent=47 // pred_region
          %p272 = scmp.lt.s32.totalorder %s22, 1
          %s273 = scalar_select %p272, %s22, 1
          %s274 = smul.addr %s273, 8
          %s275 = scalar_lea.vmem %s2, %s274
        $region52: #{tpu_custom_call.1} parent=47 // pred_fallthru
          _
      $region48: #{tpu_custom_call.1} parent=5 // pred_fallthru
        _
    $region6: #{tpu_custom_call.1} parent=1 // loop_footer
      %s15 = sadd.s32 1, %s11
    $region7: #{tpu_custom_call.1} parent=1 // loop_footer_branch
      %10 = sbr.rel target = $region3
    $region8: #{tpu_custom_call.1} parent=1 // loop_exit
      _
    %276 = vsyncpa [#allocation6], 1
    %s277 = scalar_lea.sflag [#allocation6], 1
    %278 = vsyncpa %s277, 1

</llo_original>
